<compile_context>
chip_gen: v5e
topology: v5e:2x2
jax: 0.10.0
libtpu: 0.0.40
codegen_flags: <defaults>
</compile_context>

<pallas_src>
import functools

import numpy as np

import jax
import jax.numpy as jnp
from jax.experimental import pallas as pl
from jax.experimental.pallas import tpu as pltpu


# Set to jnp.bfloat16 on v6e/v7x for ~2x MXU throughput (accumulation stays f32);
# kept at float32 here so the numerical check against the f32 reference stays tight.
_MXU_DTYPE = jnp.float32
_VMEM_LIMIT = 32 * 1024 * 1024
_BN_EPS = 1e-5


# --------------------------------------------------------------------------- #
# Small helpers: boundary masks + pltpu.roll convention detection
# --------------------------------------------------------------------------- #
@functools.lru_cache(maxsize=None)
def _boundary_masks(img_h, img_w):
    """(8, H*W) f32 masks (taps in (dh,dw) order, centre tap skipped).

    mask[p] = 1 iff the 3x3 neighbour (h+dh, w+dw) of flat position p is inside the
    image; multiplying the rolled activation by it reproduces zero 'same' padding.
    """
    p = np.arange(img_h * img_w)
    h, w = p // img_w, p % img_w
    rows = []
    for dh in (-1, 0, 1):
        for dw in (-1, 0, 1):
            if dh == 0 and dw == 0:
                continue
            ok = (h + dh >= 0) & (h + dh < img_h) & (w + dw >= 0) & (w + dw < img_w)
            rows.append(ok.astype(np.float32))
    return np.stack(rows)


@functools.lru_cache(maxsize=None)
def _roll_sign():
    """Resolve pltpu.roll's rotation convention once (guards against semantic drift)."""

    def kern(x_ref, o_ref):
        o_ref[...] = pltpu.roll(x_ref[...], shift=3, axis=1)

    x = np.arange(8 * 256, dtype=np.float32).reshape(8, 256)
    y = np.asarray(
        pl.pallas_call(kern, out_shape=jax.ShapeDtypeStruct((8, 256), jnp.float32))(
            jnp.asarray(x)))
    if np.array_equal(y, np.roll(x, 3, axis=1)):
        return 1
    if np.array_equal(y, np.roll(x, -3, axis=1)):
        return -1
    raise RuntimeError("unexpected pltpu.roll semantics")


# --------------------------------------------------------------------------- #
# Pallas kernels
# --------------------------------------------------------------------------- #
def _bn_relu_conv_kernel(x_ref, w_ref, sc_ref, sh_ref, b_ref, m_ref, o_ref, *,
                         img_w, apply_bn_relu, roll_sign, mxu_dtype):
    """y = Conv3x3(ReLU(x*scale+shift)) + b  (BN/ReLU optional), flat spatial layout.

    x_ref: (1, Cin, HW)   w_ref: (9, Cout, Cin)   sc/sh: (Cin, 1)
    b_ref: (Cout, 1)      m_ref: (8, HW)          o_ref: (1, Cout, HW)
    """
    cin = x_ref.shape[1]
    hw = x_ref.shape[2]
    x = x_ref[0, :, :]
    if apply_bn_relu:
        act = jnp.maximum(x * sc_ref[...] + sh_ref[...], 0.0)
    else:
        act = x

    acc = None
    for t in range(9):
        dh, dw = t // 3 - 1, t % 3 - 1
        s = dh * img_w + dw
        if s == 0:
            patch = act
        else:
            mi = t if t < 4 else t - 1
            rolled = pltpu.roll(act, shift=(-s * roll_sign) % hw, axis=1)
            patch = rolled * m_ref[pl.ds(mi, 1), :]
        w_t = w_ref[t, :, :]                                   # (Cout, Cin)
        if cin == 1:
            d = w_t * patch                                    # VPU outer product
        else:
            d = jnp.dot(w_t.astype(mxu_dtype), patch.astype(mxu_dtype),
                        preferred_element_type=jnp.float32)
        acc = d if acc is None else acc + d

    o_ref[0, :, :] = (acc + b_ref[...]).astype(o_ref.dtype)


def _drb_kernel(x_ref, w_ref, sc_ref, sh_ref, b_ref, m_ref, o_ref,
                acc_ref, slab_ref, *, img_w, res_scale, roll_sign, mxu_dtype):
    """Fused DenseResidualBlock: 5x (BN->ReLU->Conv3x3) on a growing virtual concat,
    with intermediates kept in VMEM, plus the `out5*res_scale + x` epilogue.

    x_ref: (1, F, HW)         w_ref: (135, F, F)  [index = tap*15 + (k(k-1)/2 + j)]
    sc/sh: (15F, 1)           b_ref: (5F, 1)       m_ref: (8, HW)
    o_ref: (1, F, HW)         acc_ref: VMEM (F, HW) f32   slab_ref: VMEM (4, F, HW) f32
    """
    f = x_ref.shape[1]
    hw = x_ref.shape[2]

    for k in range(1, 6):                      # dense stage k (conv over k slabs)
        base = k * (k - 1) // 2
        for j in range(k):                     # slab j of the virtual concat
            r = base + j
            src = x_ref[0, :, :] if j == 0 else slab_ref[j - 1, :, :]
            sc = sc_ref[pl.ds(r * f, f), :]
            sh = sh_ref[pl.ds(r * f, f), :]
            act = jnp.maximum(src * sc + sh, 0.0)

            c = None
            for t in range(9):
                dh, dw = t // 3 - 1, t % 3 - 1
                s = dh * img_w + dw
                if s == 0:
                    patch = act
                else:
                    mi = t if t < 4 else t - 1
                    rolled = pltpu.roll(act, shift=(-s * roll_sign) % hw, axis=1)
                    patch = rolled * m_ref[pl.ds(mi, 1), :]
                w_t = w_ref[t * 15 + r, :, :]                  # (F, F) = (Cout, Cin)
                d = jnp.dot(w_t.astype(mxu_dtype), patch.astype(mxu_dtype),
                            preferred_element_type=jnp.float32)
                c = d if c is None else c + d

            if j == 0:
                acc_ref[...] = c
            else:
                acc_ref[...] += c

        out_k = acc_ref[...] + b_ref[pl.ds((k - 1) * f, f), :]
        if k < 5:
            slab_ref[k - 1, :, :] = out_k
        else:
            o_ref[0, :, :] = (out_k * res_scale + x_ref[0, :, :]).astype(o_ref.dtype)


# --------------------------------------------------------------------------- #
# pallas_call wrappers (no per-op jit: the whole forward is jitted once)
# --------------------------------------------------------------------------- #
def fused_conv3x3(x_flat, packed, img_h, img_w, *, apply_bn_relu):
    """x_flat: (N, Cin, H*W) -> (N, Cout, H*W)."""
    n, cin, hw = x_flat.shape
    assert hw == img_h * img_w
    wt, b = packed["wt"], packed["b"]                          # (9, Cout, Cin), (Cout, 1)
    cout = wt.shape[1]
    cout_p = ((cout + 7) // 8) * 8                             # pad Cout=1 (last conv) to 8
    if cout_p != cout:
        wt = jnp.pad(wt, ((0, 0), (0, cout_p - cout), (0, 0)))
        b = jnp.pad(b, ((0, cout_p - cout), (0, 0)))
    if apply_bn_relu:
        sc, sh = packed["scale"], packed["shift"]
    else:
        sc = jnp.ones((cin, 1), jnp.float32)
        sh = jnp.zeros((cin, 1), jnp.float32)
    masks = jnp.asarray(_boundary_masks(img_h, img_w))

    kern = functools.partial(_bn_relu_conv_kernel, img_w=img_w,
                             apply_bn_relu=apply_bn_relu,
                             roll_sign=_roll_sign(), mxu_dtype=_MXU_DTYPE)
    out = pl.pallas_call(
        kern,
        out_shape=jax.ShapeDtypeStruct((n, cout_p, hw), x_flat.dtype),
        grid=(n,),
        in_specs=[
            pl.BlockSpec((1, cin, hw), lambda i: (i, 0, 0)),
            pl.BlockSpec((9, cout_p, cin), lambda i: (0, 0, 0)),
            pl.BlockSpec((cin, 1), lambda i: (0, 0)),
            pl.BlockSpec((cin, 1), lambda i: (0, 0)),
            pl.BlockSpec((cout_p, 1), lambda i: (0, 0)),
            pl.BlockSpec((8, hw), lambda i: (0, 0)),
        ],
        out_specs=pl.BlockSpec((1, cout_p, hw), lambda i: (i, 0, 0)),
        compiler_params=pltpu.CompilerParams(
            dimension_semantics=("parallel",),
            vmem_limit_bytes=_VMEM_LIMIT),
    )(x_flat, wt, sc, sh, b, masks)
    if cout_p != cout:
        out = out[:, :cout, :]
    return out


def fused_drb(x_flat, packed, img_h, img_w, res_scale=0.2):
    """One DenseResidualBlock: (N, F, H*W) -> (N, F, H*W) in a single pallas_call."""
    n, f, hw = x_flat.shape
    assert hw == img_h * img_w
    masks = jnp.asarray(_boundary_masks(img_h, img_w))

    kern = functools.partial(_drb_kernel, img_w=img_w, res_scale=res_scale,
                             roll_sign=_roll_sign(), mxu_dtype=_MXU_DTYPE)
    return pl.pallas_call(
        kern,
        out_shape=jax.ShapeDtypeStruct((n, f, hw), x_flat.dtype),
        grid=(n,),
        in_specs=[
            pl.BlockSpec((1, f, hw), lambda i: (i, 0, 0)),
            pl.BlockSpec((135, f, f), lambda i: (0, 0, 0)),
            pl.BlockSpec((15 * f, 1), lambda i: (0, 0)),
            pl.BlockSpec((15 * f, 1), lambda i: (0, 0)),
            pl.BlockSpec((5 * f, 1), lambda i: (0, 0)),
            pl.BlockSpec((8, hw), lambda i: (0, 0)),
        ],
        out_specs=pl.BlockSpec((1, f, hw), lambda i: (i, 0, 0)),
        scratch_shapes=[
            pltpu.VMEM((f, hw), jnp.float32),        # conv accumulator
            pltpu.VMEM((4, f, hw), jnp.float32),     # dense slabs out1..out4
        ],
        compiler_params=pltpu.CompilerParams(
            dimension_semantics=("parallel",),
            vmem_limit_bytes=_VMEM_LIMIT),
    )(x_flat, packed["wt"], packed["scale"], packed["shift"], packed["b"], masks)


# --------------------------------------------------------------------------- #
# Parameter init (synthetic, deterministic) and packing into kernel layout
# --------------------------------------------------------------------------- #
def _init_conv(key, cin, cout):
    kw, kb = jax.random.split(key)
    w = jax.random.normal(kw, (3, 3, cin, cout), jnp.float32) / np.sqrt(9.0 * cin)
    b = 0.01 * jax.random.normal(kb, (cout,), jnp.float32)
    return {"w": w, "b": b}


def _init_bn_conv(key, cin, cout):
    k1, k2, k3, k4, k5 = jax.random.split(key, 5)
    gamma = 1.0 + 0.1 * jax.random.normal(k1, (cin,), jnp.float32)
    beta = 0.1 * jax.random.normal(k2, (cin,), jnp.float32)
    mean = 0.1 * jax.random.normal(k3, (cin,), jnp.float32)
    var = 1.0 + 0.1 * jnp.abs(jax.random.normal(k4, (cin,), jnp.float32))
    scale = gamma / jnp.sqrt(var + _BN_EPS)         # inference-mode BN folded
    shift = beta - mean * scale
    d = _init_conv(k5, cin, cout)
    d["scale"] = scale
    d["shift"] = shift
    return d


def _init_drb(key, filters):
    keys = jax.random.split(key, 5)
    return [_init_bn_conv(keys[i], (i + 1) * filters, filters) for i in range(5)]


def _init_rrdb(key, filters):
    return [_init_drb(k, filters) for k in jax.random.split(key, 3)]


def init_decoder_params(key, inchannels=1, outchannels=1, filters=48, num_res_blocks=1):
    keys = jax.random.split(key, 5)
    return {
        "conv1": _init_conv(keys[0], inchannels, filters),
        "res_block1": [_init_rrdb(k, filters)
                       for k in jax.random.split(keys[1], num_res_blocks + 1)],
        "transup1": _init_bn_conv(keys[2], filters, filters),
        "res_block2": [_init_rrdb(k, filters)
                       for k in jax.random.split(keys[3], num_res_blocks)],
        "transup2": _init_bn_conv(keys[4], filters, outchannels),
    }


def _pack_conv(p):
    w = p["w"]
    cin, cout = w.shape[2], w.shape[3]
    packed = {"wt": jnp.transpose(w.reshape(9, cin, cout), (0, 2, 1)),   # (9, Cout, Cin)
              "b": p["b"].reshape(cout, 1)}
    if "scale" in p:
        packed["scale"] = p["scale"].reshape(cin, 1)
        packed["shift"] = p["shift"].reshape(cin, 1)
    return packed


def _pack_drb(stages, f):
    wt_rows, sc_parts, sh_parts, b_parts = [], [], [], []
    for k, p in enumerate(stages, start=1):
        w = p["w"].reshape(9, k * f, f)
        for j in range(k):
            wt_rows.append(jnp.transpose(w[:, j * f:(j + 1) * f, :], (0, 2, 1)))
        sc_parts.append(p["scale"])
        sh_parts.append(p["shift"])
        b_parts.append(p["b"])
    return {
        "wt": jnp.stack(wt_rows, axis=1).reshape(9 * 15, f, f),
        "scale": jnp.concatenate(sc_parts).reshape(15 * f, 1),
        "shift": jnp.concatenate(sh_parts).reshape(15 * f, 1),
        "b": jnp.concatenate(b_parts).reshape(5 * f, 1),
    }


def pack_decoder_params(params, filters):
    return {
        "conv1": _pack_conv(params["conv1"]),
        "res_block1": [[_pack_drb(drb, filters) for drb in rrdb]
                       for rrdb in params["res_block1"]],
        "transup1": _pack_conv(params["transup1"]),
        "res_block2": [[_pack_drb(drb, filters) for drb in rrdb]
                       for rrdb in params["res_block2"]],
        "transup2": _pack_conv(params["transup2"]),
    }


# --------------------------------------------------------------------------- #
# Forward pass (single jit; glue is only reshapes / upsample / residual adds)
# --------------------------------------------------------------------------- #
def _upsample2x_flat(x_flat, img_h, img_w):
    n, c, hw = x_flat.shape
    x = x_flat.reshape(n, c, img_h, img_w)
    x = jnp.repeat(jnp.repeat(x, 2, axis=2), 2, axis=3)
    return x.reshape(n, c, 4 * hw)


def _rrdb_forward(x, rrdb_packed, img_h, img_w, res_scale=0.2):
    y = x
    for drb in rrdb_packed:
        y = fused_drb(y, drb, img_h, img_w)
    return y * res_scale + x


def decoder_forward(z, packed):
    n, cin, img_h, img_w = z.shape
    x = z.reshape(n, cin, img_h * img_w)

    out1 = fused_conv3x3(x, packed["conv1"], img_h, img_w, apply_bn_relu=False)
    out2 = out1
    for rrdb in packed["res_block1"]:
        out2 = _rrdb_forward(out2, rrdb, img_h, img_w)
    out = out1 + out2

    # transup1: BN->ReLU->Upsample->Conv  ==  Upsample -> fused(BN->ReLU->Conv)
    up = _upsample2x_flat(out, img_h, img_w)
    img_h, img_w = 2 * img_h, 2 * img_w
    out3 = fused_conv3x3(up, packed["transup1"], img_h, img_w, apply_bn_relu=True)

    out4 = out3
    for rrdb in packed["res_block2"]:
        out4 = _rrdb_forward(out4, rrdb, img_h, img_w)

    up2 = _upsample2x_flat(out4, img_h, img_w)
    img_h, img_w = 2 * img_h, 2 * img_w
    img = fused_conv3x3(up2, packed["transup2"], img_h, img_w, apply_bn_relu=True)
    return img.reshape(n, img.shape[1], img_h, img_w)


# --------------------------------------------------------------------------- #
# Pure-JAX reference (for the correctness assert)
# --------------------------------------------------------------------------- #
def _conv3x3_ref(x, w, b):
    y = jax.lax.conv_general_dilated(
        x, w, window_strides=(1, 1), padding="SAME",
        dimension_numbers=("NCHW", "HWIO", "NCHW"),
        precision=jax.lax.Precision.HIGHEST)
    return y + b.reshape(1, -1, 1, 1)


def _bn_relu_ref(x, scale, shift):
    return jnp.maximum(x * scale.reshape(1, -1, 1, 1) + shift.reshape(1, -1, 1, 1), 0.0)


def _drb_ref(x, stages, res_scale=0.2):
    inputs, out = x, x
    for p in stages:
        out = _conv3x3_ref(_bn_relu_ref(inputs, p["scale"], p["shift"]), p["w"], p["b"])
        inputs = jnp.concatenate([inputs, out], axis=1)
    return out * res_scale + x


def _rrdb_ref(x, drbs, res_scale=0.2):
    y = x
    for d in drbs:
        y = _drb_ref(y, d)
    return y * res_scale + x


def _transup_ref(x, p):
    act = _bn_relu_ref(x, p["scale"], p["shift"])
    up = jnp.repeat(jnp.repeat(act, 2, axis=2), 2, axis=3)
    return _conv3x3_ref(up, p["w"], p["b"])


def decoder_reference(z, params):
    out1 = _conv3x3_ref(z, params["conv1"]["w"], params["conv1"]["b"])
    out2 = out1
    for rrdb in params["res_block1"]:
        out2 = _rrdb_ref(out2, rrdb)
    out = out1 + out2
    out3 = _transup_ref(out, params["transup1"])
    out4 = out3
    for rrdb in params["res_block2"]:
        out4 = _rrdb_ref(out4, rrdb)
    return _transup_ref(out4, params["transup2"])


# --------------------------------------------------------------------------- #
if __name__ == "__main__":
    key = jax.random.PRNGKey(0)
    kp, kz = jax.random.split(key)

    inchannels, outchannels, filters, num_res_blocks = 1, 1, 48, 1
    params = init_decoder_params(kp, inchannels, outchannels, filters, num_res_blocks)
    packed = pack_decoder_params(params, filters)

    # NCHW input, batch=2, 16x16 -> output 64x64 after the two transup stages.
    z = jax.random.normal(kz, (2, inchannels, 16, 16), jnp.float32)

    _roll_sign()  # resolve the hardware roll convention before tracing the main kernels

    fwd = jax.jit(decoder_forward)
    img = jax.block_until_ready(fwd(z, packed))

    assert img.shape == (2, outchannels, 64, 64), img.shape
    assert bool(jnp.all(jnp.isfinite(img)))

    # Numerical check against the pure-JAX reference decoder.
    ref = jax.block_until_ready(jax.jit(decoder_reference)(z, params))
    rel = float(jnp.sqrt(jnp.sum((img - ref) ** 2)) /
                (jnp.sqrt(jnp.sum(ref ** 2)) + 1e-6))
    assert rel < 5e-2, rel

    print("KERNEL_OK")
</pallas_src>

<mosaic_0001>
module attributes {stable_mosaic.version = 11 : i64} {
  func.func @kern(%arg0: memref<8x256xf32, #tpu.memory_space<vmem>>, %arg1: memref<8x256xf32, #tpu.memory_space<vmem>>) attributes {dimension_semantics = [], scalar_prefetch = 0 : i64, scratch_operands = 0 : i64, tpu.core_type = #tpu.core_type<tc>} {
    %c0 = arith.constant 0 : index
    %c0_0 = arith.constant 0 : index
    %0 = vector.load %arg0[%c0, %c0_0] : memref<8x256xf32, #tpu.memory_space<vmem>>, vector<8x256xf32>
    %c3_i32 = arith.constant 3 : i32
    %1 = tpu.dynamic_rotate %0 by %c3_i32 dim 1 : vector<8x256xf32>, i32 -> vector<8x256xf32>
    %c0_1 = arith.constant 0 : index
    %c0_2 = arith.constant 0 : index
    %2 = vector.load %arg1[%c0_1, %c0_2] : memref<8x256xf32, #tpu.memory_space<vmem>>, vector<8x256xf32>
    tpu.vector_store %arg1[%c0_1, %c0_2], %1 {strides = array<i32>} : memref<8x256xf32, #tpu.memory_space<vmem>>, vector<8x256xf32>,
    return
  }
}

</mosaic_0001>

<llo_original>
// kernel: tpu_custom_call.1
$region0: #{tpu_custom_call.1}
  #allocation0 [shape = 'u32[]', space=smem, size = 0x4, offset = 0x4, fixed_abs, tag = 'smem constant byte address 0x4 - core index']
  #allocation1 [shape = 'u32[72,128]{1,0:T(1,128)}', space=vmem, size = 0x9000, scoped, tag = 'internal scratch']
  %s0 = inlined_call_operand.hbm [shape: f32[8,256], index: 0, kind: input, shape index: {}]
  %s1 = inlined_call_operand.hbm [shape: f32[8,256], index: 1, kind: output, shape index: {}]
  %s2 = sld [smem:[#allocation0]]
  $region18: #{tpu_custom_call.1} parent=0
    _
  %s4 = ssub.s32 1, %s2
  %s5 = scalar_select 0, %s4, %s2
  $region1: #{tpu_custom_call.1} parent=0
    #allocation2 [shape = 'u8[8192]{0}', space=vmem, size = 0x2000, scoped, tag = 'input window, operand 0, single buffered']
    #allocation3 [shape = 's32[1]{0}', space=sflag, size = 0x4, scoped, tag = 'scoped memory for tpu_custom_call.1']
    #allocation4 [shape = 's32[1]{0}', space=sflag, size = 0x4, scoped, tag = 'scoped memory for tpu_custom_call.1']
    #allocation5 [shape = 'u8[8192]{0}', space=vmem, size = 0x2000, scoped, tag = 'output window, operand 0, single buffered']
    %6 = vsyncpa [#allocation3], 0
    %7 = vsyncpa [#allocation4], 0
    // Predicated region
    $region2: #{tpu_custom_call.1} parent=1 // pred_check
      _
    $region3: #{tpu_custom_call.1} parent=1 // pred_check_branch
      %9 = sbr.rel (0) target = $region5
    $region4: #{tpu_custom_call.1} parent=1 // pred_region
      %11 = vsyncadd [#allocation3], 0
      %s13 = sshll.u32 %s0, 4
      %s14 = int_to_ptr.hbm [resolvable:$true] %s13
      %s15 = sshll.u32 [#allocation2], 4
      %s16 = int_to_ptr.vmem [resolvable:$true] %s15
      %18 = dma.hbm_to_vmem [thread:$0]  %s14, 256, %s16, [#allocation3]
    $region5: #{tpu_custom_call.1} parent=1 // pred_fallthru
      _
    // Predicated region
    $region6: #{tpu_custom_call.1} parent=1 // pred_check
      _
    $region7: #{tpu_custom_call.1} parent=1 // pred_check_branch
      %20 = sbr.rel (0) target = $region9
    $region8: #{tpu_custom_call.1} parent=1 // pred_region
      %22 = dma.done [#allocation3], 256
    $region9: #{tpu_custom_call.1} parent=1 // pred_fallthru
      _
    %v23 = vld [vmem:[#allocation2] sm:$0xff]
    %v24 = vld [vmem:[#allocation2 + $0x8] sm:$0xff]
    %25 = vrot.lane.b32.xlu0 %v23, 3
    %v26 = vpop.permute.xlu0 %25
    %27 = vrot.lane.b32.xlu0 %v24, 3
    %v28 = vpop.permute.xlu0 %27
    %v29 = vlaneseq
    %v30 = vand.u32 %v29, 127
    %vm31 = vcmp.lt.s32.totalorder %v30, 3
    %v32 = vsel %vm31, %v26, %v28
    %v33 = vsel %vm31, %v28, %v26
    %34 = vst [vmem:[#allocation5] sm:$0xff] %v33
    %35 = vst [vmem:[#allocation5 + $0x8] sm:$0xff] %v32
    // Predicated region
    $region10: #{tpu_custom_call.1} parent=1 // pred_check
      _
    $region11: #{tpu_custom_call.1} parent=1 // pred_check_branch
      %37 = sbr.rel (0) target = $region13
    $region12: #{tpu_custom_call.1} parent=1 // pred_region
      %39 = vsyncadd [#allocation4], 0
      %s41 = sshll.u32 [#allocation5], 4
      %s42 = int_to_ptr.vmem [resolvable:$true] %s41
      %s43 = sshll.u32 %s1, 4
      %s44 = int_to_ptr.hbm [resolvable:$true] %s43
      %46 = dma.vmem_to_hbm [thread:$0]  %s42, 256, %s44, [#allocation4]
    $region13: #{tpu_custom_call.1} parent=1 // pred_fallthru
      _
    // Predicated region
    $region14: #{tpu_custom_call.1} parent=1 // pred_check
      _
    $region15: #{tpu_custom_call.1} parent=1 // pred_check_branch
      %48 = sbr.rel (0) target = $region17
    $region16: #{tpu_custom_call.1} parent=1 // pred_region
      %50 = dma.done [#allocation4], 256
    $region17: #{tpu_custom_call.1} parent=1 // pred_fallthru
      _
    %51 = vsyncpa [#allocation3], 1
    %52 = vsyncpa [#allocation4], 1

</llo_original>
